<compile_context>
chip_gen: v6e
topology: v6e:2x2x1
jax: 0.10.0
libtpu: 0.0.40
codegen_flags: <defaults>
</compile_context>

<pallas_src>
import functools

import jax
import jax.numpy as jnp
from jax.experimental import pallas as pl
from jax.experimental.pallas import tpu as pltpu

_NEG_BIG = 1e9


def _round_up(x, m):
    return ((x + m - 1) // m) * m


def _elu(x):
    # exp only ever sees non-positive values -> no overflow on the dead branch.
    return jnp.where(x > 0, x, jnp.exp(jnp.minimum(x, 0.0)) - 1.0)


# ----------------------- hardware / capability probing -----------------------

@functools.lru_cache(maxsize=None)
def _tpu_info():
    """(vmem_capacity_bytes, is_v7, bf16_eup_gen) with safe fallbacks."""
    try:
        kind = jax.devices()[0].device_kind.lower()
    except Exception:
        kind = ""
    is_v7 = "v7" in kind
    bf16_eup_gen = ("v6" in kind) or is_v7
    try:
        cap = int(pltpu.get_tpu_info().vmem_capacity_bytes)
    except Exception:
        cap = (64 << 20) if is_v7 else (128 << 20)
    return cap, is_v7, bf16_eup_gen


@functools.lru_cache(maxsize=None)
def _single_buffer_ok():
    """Probe pipeline_mode=pl.Buffered(1) for grid-invariant operands."""
    def k(x_ref, o_ref):
        o_ref[...] = x_ref[...] * 1.0
    try:
        x = jnp.ones((8, 128), jnp.float32)
        out = pl.pallas_call(
            k, grid=(2,),
            in_specs=[pl.BlockSpec((8, 128), lambda i: (0, 0),
                                   pipeline_mode=pl.Buffered(1))],
            out_specs=pl.BlockSpec((8, 128), lambda i: (i, 0)),
            out_shape=jax.ShapeDtypeStruct((16, 128), jnp.float32),
        )(x)
        out = jax.block_until_ready(out)
        return bool(jnp.allclose(out, 1.0))
    except Exception:
        return False


@functools.lru_cache(maxsize=None)
def _bf16_exp_ok():
    """Probe bf16 exp lowering (bf16 EUP on v6e/v7x); fall back to f32."""
    def k(x_ref, o_ref):
        o_ref[...] = jnp.exp(x_ref[...].astype(jnp.bfloat16)).astype(jnp.float32)
    try:
        x = jnp.zeros((8, 128), jnp.float32)
        out = pl.pallas_call(
            k, grid=(1,),
            in_specs=[pl.BlockSpec((8, 128), lambda i: (0, 0))],
            out_specs=pl.BlockSpec((8, 128), lambda i: (0, 0)),
            out_shape=jax.ShapeDtypeStruct((8, 128), jnp.float32),
        )(x)
        jax.block_until_ready(out)
        return True
    except Exception:
        return False


def _invariant_spec(block_shape, index_map):
    """BlockSpec for a grid-invariant operand; single-buffered when supported."""
    if _single_buffer_ok():
        return pl.BlockSpec(block_shape, index_map, pipeline_mode=pl.Buffered(1))
    return pl.BlockSpec(block_shape, index_map)


# ------------------------------ tile selection --------------------------------

def _row_tile_candidates(n_pad):
    cands = [t for t in (512, 256, 128) if n_pad % t == 0]
    return cands if cands else [n_pad]


def _choose_proj_tile(n_pad):
    _, is_v7, _ = _tpu_info()
    cands = _row_tile_candidates(n_pad)
    if is_v7 and n_pad >= 256:
        for t in cands:
            if t <= n_pad // 2:          # >=2 grid steps for the 2 TensorCores
                return t
    return cands[0]


def _choose_attend_tile(n_pad, num_heads, hd_cols, out_cols, has_res):
    """Generation-aware dst-row tile and vmem_limit for the attention kernel."""
    cap, is_v7, _ = _tpu_info()
    budget = int(cap * 0.75)
    f32, bf16 = 4, 2
    res_mult = 1 if _single_buffer_ok() else 2
    resident = (n_pad * hd_cols + num_heads * n_pad) * f32 * res_mult

    def step_bytes(tm):
        per_tile = (tm * num_heads * f32                 # er
                    + tm * n_pad * bf16                  # adjacency bias (bf16)
                    + (tm * hd_cols * f32 if has_res else 0)
                    + tm * out_cols * f32                # fused output
                    + num_heads * tm * n_pad * bf16)     # attention maps (bf16)
        temps = 4 * tm * n_pad * f32                     # softmax temporaries
        return 2 * per_tile + temps                      # double-buffered tiles

    cands = _row_tile_candidates(n_pad)
    slack = 4 << 20
    tm = cands[-1]
    for t in cands:
        if is_v7 and n_pad >= 256 and t > n_pad // 2:
            continue                                     # keep both v7x TCs busy
        if resident + step_bytes(t) + slack <= budget:
            tm = t
            break
    est = resident + step_bytes(tm) + slack
    vmem_limit = int(min(max(est, 32 << 20), int(cap * 0.85)))
    return tm, vmem_limit


# --------------------------- projection kernel -------------------------------

def _project_kernel(x_ref, w_ref, o_ref):
    # One fused MXU matmul: h @ [W | res_W? | W@A_l | W@A_r | 0-pad]
    o_ref[...] = jnp.dot(x_ref[...], w_ref[...], preferred_element_type=jnp.float32)


def gat_project(h, w_full):
    n_pad, fin = h.shape
    wtot_pad = w_full.shape[1]
    tm = _choose_proj_tile(n_pad)
    cap, _, _ = _tpu_info()
    sb = 1 if _single_buffer_ok() else 2
    est = (2 * tm * fin + sb * fin * wtot_pad + 4 * tm * wtot_pad) * 4 + (4 << 20)
    vmem_limit = int(min(max(est, 32 << 20), int(cap * 0.85)))

    return pl.pallas_call(
        _project_kernel,
        grid=(n_pad // tm,),
        in_specs=[pl.BlockSpec((tm, fin), lambda i: (i, 0)),
                  _invariant_spec((fin, wtot_pad), lambda i: (0, 0))],
        out_specs=pl.BlockSpec((tm, wtot_pad), lambda i: (i, 0)),   # lane-dense store
        out_shape=jax.ShapeDtypeStruct((n_pad, wtot_pad), jnp.float32),
        compiler_params=pltpu.CompilerParams(
            dimension_semantics=("parallel",), vmem_limit_bytes=vmem_limit),
    )(h, w_full)


# ---------------------------- attention kernel --------------------------------

def make_attend_kernel(num_heads, out_dim, negative_slope, has_res,
                       apply_inner_act, apply_outer_act, mean_heads, exp_bf16):
    """Per dst-tile: masked softmax over src + per-head MXU aggregation."""

    def kernel(*refs):
        if has_res:
            feat_ref, elt_ref, er_ref, bias_ref, res_ref, out_ref, attn_ref = refs
        else:
            feat_ref, elt_ref, er_ref, bias_ref, out_ref, attn_ref = refs
            res_ref = None

        bias = bias_ref[...].astype(jnp.float32)        # (TM, N): 0 edge, -1e9 off
        er = er_ref[...]                                # (TM, H)
        el_t = elt_ref[...]                             # (H, N) resident

        acc = None
        for hd in range(num_heads):                     # static unroll over heads
            e = er[:, hd:hd + 1] + el_t[hd:hd + 1, :]   # (TM, N)
            e = jnp.where(e > 0, e, negative_slope * e) # LeakyReLU
            e = e + bias                                # off-edge exp underflows to 0
            m = jnp.max(e, axis=-1, keepdims=True)
            z = e - m
            if exp_bf16:                                # bf16 EUP on v6e/v7x
                p = jnp.exp(z.astype(jnp.bfloat16)).astype(jnp.float32)
            else:
                p = jnp.exp(z)
            s = jnp.sum(p, axis=-1, keepdims=True)      # >= 1 (self loop present)
            alpha = p * pl.reciprocal(s, approx=True)   # EUP reciprocal
            attn_ref[hd, :, :] = alpha.astype(jnp.bfloat16)

            fh = feat_ref[:, hd * out_dim:(hd + 1) * out_dim]       # (N, D)
            agg = jnp.dot(alpha, fh, preferred_element_type=jnp.float32)

            if mean_heads:                              # final layer: mean over heads
                acc = agg if acc is None else acc + agg
            else:
                v = agg
                if has_res:
                    v = v + res_ref[:, hd * out_dim:(hd + 1) * out_dim]
                if apply_inner_act:                     # GATConv activation (mid layers)
                    v = _elu(v)
                if apply_outer_act:                     # GAT.forward ELU (both applied,
                    v = _elu(v)                         # matching the reference)
                out_ref[:, hd * out_dim:(hd + 1) * out_dim] = v

        if mean_heads:
            if has_res:
                for hd in range(num_heads):
                    acc = acc + res_ref[:, hd * out_dim:(hd + 1) * out_dim]
            out_ref[...] = acc * (1.0 / num_heads)

    return kernel


def gat_attend(feat, el_t, er, bias, res, *, num_heads, out_dim, negative_slope,
               apply_inner_act, apply_outer_act, mean_heads):
    n_pad, hd_cols = feat.shape
    has_res = res is not None
    out_cols = out_dim if mean_heads else hd_cols
    tm, vmem_limit = _choose_attend_tile(n_pad, num_heads, hd_cols, out_cols, has_res)
    _, _, bf16_gen = _tpu_info()
    exp_bf16 = bf16_gen and _bf16_exp_ok()

    in_arrays = [feat, el_t, er, bias]
    in_specs = [_invariant_spec((n_pad, hd_cols), lambda i: (0, 0)),    # feat resident
                _invariant_spec((num_heads, n_pad), lambda i: (0, 0)),  # el^T resident
                pl.BlockSpec((tm, num_heads), lambda i: (i, 0)),        # er per dst tile
                pl.BlockSpec((tm, n_pad), lambda i: (i, 0))]            # bf16 bias tile
    if has_res:
        in_arrays.append(res)
        in_specs.append(pl.BlockSpec((tm, hd_cols), lambda i: (i, 0)))

    out, attn = pl.pallas_call(
        make_attend_kernel(num_heads, out_dim, negative_slope, has_res,
                           apply_inner_act, apply_outer_act, mean_heads, exp_bf16),
        grid=(n_pad // tm,),
        in_specs=in_specs,
        out_specs=(pl.BlockSpec((tm, out_cols), lambda i: (i, 0)),
                   pl.BlockSpec((num_heads, tm, n_pad), lambda i: (0, i, 0))),
        out_shape=(jax.ShapeDtypeStruct((n_pad, out_cols), jnp.float32),
                   jax.ShapeDtypeStruct((num_heads, n_pad, n_pad), jnp.bfloat16)),
        compiler_params=pltpu.CompilerParams(
            dimension_semantics=("parallel",), vmem_limit_bytes=vmem_limit),
    )(*in_arrays)
    return out, attn


# ------------------------------- parameters ----------------------------------

def init_gat_params(key, d_data, num_hidden, n_cls, heads, residual=True):
    """Synthetic parameters mirroring GAT.__init__ layer shapes.

    Per layer the weights are pre-fused and zero-padded to 128 lanes:
        w_full = [W | res_W (projected residual only) | W@A_l | W@A_r | 0-pad]
    so the projection kernel is one lane-dense MXU matmul.
    """
    num_layers = len(heads) - 1
    layers = []
    in_dim = d_data
    for l in range(num_layers + 1):
        is_last = l == num_layers
        out_dim = n_cls if is_last else num_hidden
        h = heads[l]
        key, kw, kal, kar, kres = jax.random.split(key, 5)
        w = 0.1 * jax.random.normal(kw, (in_dim, h * out_dim), jnp.float32)
        attn_l = 0.1 * jax.random.normal(kal, (h, out_dim), jnp.float32)
        attn_r = 0.1 * jax.random.normal(kar, (h, out_dim), jnp.float32)

        layer_res = residual and l >= 1            # layer 0: residual=False (spec)
        if not layer_res:
            res_mode, res_w = "none", None
        elif in_dim == h * out_dim:
            res_mode, res_w = "identity", None     # free VPU add of the layer input
        else:
            res_mode = "proj"
            res_w = 0.1 * jax.random.normal(kres, (in_dim, h * out_dim), jnp.float32)

        # el = feat @ A_l = h @ (W @ A_l): fold attention vectors into W host-side.
        w_heads = w.reshape(in_dim, h, out_dim)
        wa_l = jnp.einsum("fhd,hd->fh", w_heads, attn_l)
        wa_r = jnp.einsum("fhd,hd->fh", w_heads, attn_r)
        parts = [w] + ([res_w] if res_mode == "proj" else []) + [wa_l, wa_r]
        w_full = jnp.concatenate(parts, axis=1)
        wtot = w_full.shape[1]
        wtot_pad = _round_up(wtot, 128)
        if wtot_pad > wtot:
            w_full = jnp.pad(w_full, ((0, 0), (0, wtot_pad - wtot)))

        layers.append(dict(num_heads=h, out_dim=out_dim, hd_cols=h * out_dim,
                           res_mode=res_mode, w_full=w_full,
                           inner_act=(0 < l < num_layers)))
        in_dim = h * out_dim
    return layers


# --------------------------------- forward -----------------------------------

def gat_forward(adj, x, layers, negative_slope=0.2):
    """Mirrors GAT.forward: returns (logits, e_list). adj[dst, src] > 0 iff edge."""
    n = x.shape[0]
    n_pad = _round_up(n, 128)

    # Pad the graph to a lane-aligned size; padded nodes get only a self loop so
    # they stay exactly zero and never influence real nodes.
    adj_p = jnp.zeros((n_pad, n_pad), jnp.float32).at[:n, :n].set(adj)
    if n_pad > n:
        pad_idx = jnp.arange(n, n_pad)
        adj_p = adj_p.at[pad_idx, pad_idx].set(1.0)
    # Additive softmax bias precomputed once in bf16 (halves the per-layer N^2
    # HBM read); exp of the -1e9-biased logits underflows to exactly 0, so no
    # in-kernel mask is needed (every node, incl. padded ones, has a self loop).
    bias = jnp.where(adj_p > 0, 0.0, -_NEG_BIG).astype(jnp.bfloat16)

    h = jnp.zeros((n_pad, x.shape[1]), jnp.float32).at[:n, :].set(x)

    e_list = []
    last = len(layers) - 1
    for li, lp in enumerate(layers):
        is_last = li == last
        hd_cols = lp["hd_cols"]
        nh = lp["num_heads"]

        proj = gat_project(h, lp["w_full"])          # (n_pad, wtot_pad) lane-dense
        feat = proj[:, :hd_cols]
        off = 2 * hd_cols if lp["res_mode"] == "proj" else hd_cols
        el = proj[:, off:off + nh]
        er = proj[:, off + nh:off + 2 * nh]
        if lp["res_mode"] == "proj":
            res = proj[:, hd_cols:2 * hd_cols]
        elif lp["res_mode"] == "identity":
            res = h
        else:
            res = None

        h, attn = gat_attend(
            feat, jnp.transpose(el), er, bias, res,
            num_heads=nh, out_dim=lp["out_dim"], negative_slope=negative_slope,
            apply_inner_act=lp["inner_act"],
            apply_outer_act=not is_last,             # GAT.forward ELU fused in-kernel
            mean_heads=is_last)                      # final mean over heads fused
        e_list.append(attn[:, :n, :n])               # strip padded rows/cols
    return h[:n], e_list


if __name__ == "__main__":
    # Small synthetic config: num_layers=2, heads=[4,4,1]
    N = 64          # nodes
    D_DATA = 32     # input feature dim
    NUM_HIDDEN = 16
    N_CLS = 7
    HEADS = [4, 4, 1]
    NEG_SLOPE = 0.2

    key = jax.random.PRNGKey(0)
    key, kx, kadj = jax.random.split(key, 3)

    x = jax.random.normal(kx, (N, D_DATA), jnp.float32)

    # random symmetric adjacency with self loops; adj[dst, src]
    a = (jax.random.uniform(kadj, (N, N)) < 0.1).astype(jnp.float32)
    adj = jnp.maximum(jnp.maximum(a, a.T), jnp.eye(N, dtype=jnp.float32))

    layers = init_gat_params(key, D_DATA, NUM_HIDDEN, N_CLS, HEADS)

    logits, e_list = gat_forward(adj, x, layers, negative_slope=NEG_SLOPE)
    logits = jax.block_until_ready(logits)
    for e in e_list:
        jax.block_until_ready(e)

    assert logits.shape == (N, N_CLS)
    assert len(e_list) == len(HEADS)
    assert all(e.shape == (h, N, N) for e, h in zip(e_list, HEADS))
    print("KERNEL_OK")
</pallas_src>

<mosaic_0001>
module attributes {stable_mosaic.version = 11 : i64} {
  func.func @k(%arg0: i32, %arg1: memref<8x128xf32, #tpu.memory_space<vmem>>, %arg2: memref<8x128xf32, #tpu.memory_space<vmem>>) attributes {dimension_semantics = [#tpu.dimension_semantics<arbitrary>], iteration_bounds = array<i64: 2>, scalar_prefetch = 0 : i64, scratch_operands = 0 : i64, tpu.core_type = #tpu.core_type<tc>, window_params = [{pipeline_mode = #tpu.pipeline_mode<synchronous>, transform_indices = @transform_0, window_bounds = array<i64: 8, 128>}, {transform_indices = @transform_1, window_bounds = array<i64: 8, 128>}]} {
    %c0 = arith.constant 0 : index
    %c0_0 = arith.constant 0 : index
    %0 = vector.load %arg1[%c0, %c0_0] : memref<8x128xf32, #tpu.memory_space<vmem>>, vector<8x128xf32>
    %cst = arith.constant 1.000000e+00 : f32
    %1 = vector.broadcast %cst : f32 to vector<8x128xf32>
    %2 = arith.mulf %0, %1 : vector<8x128xf32>
    %c0_1 = arith.constant 0 : index
    %c0_2 = arith.constant 0 : index
    %3 = vector.load %arg2[%c0_1, %c0_2] : memref<8x128xf32, #tpu.memory_space<vmem>>, vector<8x128xf32>
    tpu.vector_store %arg2[%c0_1, %c0_2], %2 {strides = array<i32>} : memref<8x128xf32, #tpu.memory_space<vmem>>, vector<8x128xf32>,
    return
  }
  func.func @transform_0(%arg0: i32) -> (i32, i32) {
    %c0_i32 = arith.constant 0 : i32
    %c0_i32_0 = arith.constant 0 : i32
    %c0_i32_1 = arith.constant 0 : i32
    return %c0_i32, %c0_i32_0 : i32, i32
  }
  func.func @transform_1(%arg0: i32) -> (i32, i32) {
    %c0_i32 = arith.constant 0 : i32
    %c0_i32_0 = arith.constant 0 : i32
    return %arg0, %c0_i32 : i32, i32
  }
}

module attributes {stable_mosaic.version = 11 : i64} {
  func.func @_project_kernel(%arg0: i32, %arg1: memref<128x32xf32, #tpu.memory_space<vmem>>, %arg2: memref<32x128xf32, #tpu.memory_space<vmem>>, %arg3: memref<128x128xf32, #tpu.memory_space<vmem>>) attributes {dimension_semantics = [#tpu.dimension_semantics<parallel>], iteration_bounds = array<i64: 1>, scalar_prefetch = 0 : i64, scratch_operands = 0 : i64, tpu.core_type = #tpu.core_type<tc>, window_params = [{transform_indices = @transform_0, window_bounds = array<i64: 128, 32>}, {pipeline_mode = #tpu.pipeline_mode<synchronous>, transform_indices = @transform_1, window_bounds = array<i64: 32, 128>}, {transform_indices = @transform_2, window_bounds = array<i64: 128, 128>}]} {
    %c0 = arith.constant 0 : index
    %c0_0 = arith.constant 0 : index
    %0 = vector.load %arg1[%c0, %c0_0] : memref<128x32xf32, #tpu.memory_space<vmem>>, vector<128x32xf32>
    %c0_1 = arith.constant 0 : index
    %c0_2 = arith.constant 0 : index
    %1 = vector.load %arg2[%c0_1, %c0_2] : memref<32x128xf32, #tpu.memory_space<vmem>>, vector<32x128xf32>
    %cst = arith.constant dense<0.000000e+00> : vector<128x128xf32>
    %2 = tpu.matmul %0, %1, %cst {dimension_numbers = #tpu.dot_dimension_numbers<[1], [0], [0], [1], [0, 0, 1, 1], [], []>} : vector<128x32xf32>, vector<32x128xf32>, vector<128x128xf32> -> vector<128x128xf32>
    %c0_3 = arith.constant 0 : index
    %c0_4 = arith.constant 0 : index
    %3 = vector.load %arg3[%c0_3, %c0_4] : memref<128x128xf32, #tpu.memory_space<vmem>>, vector<128x128xf32>
    tpu.vector_store %arg3[%c0_3, %c0_4], %2 {strides = array<i32>} : memref<128x128xf32, #tpu.memory_space<vmem>>, vector<128x128xf32>,
    return
  }
  func.func @transform_0(%arg0: i32) -> (i32, i32) {
    %c0_i32 = arith.constant 0 : i32
    %c0_i32_0 = arith.constant 0 : i32
    return %arg0, %c0_i32 : i32, i32
  }
  func.func @transform_1(%arg0: i32) -> (i32, i32) {
    %c0_i32 = arith.constant 0 : i32
    %c0_i32_0 = arith.constant 0 : i32
    %c0_i32_1 = arith.constant 0 : i32
    return %c0_i32, %c0_i32_0 : i32, i32
  }
  func.func @transform_2(%arg0: i32) -> (i32, i32) {
    %c0_i32 = arith.constant 0 : i32
    %c0_i32_0 = arith.constant 0 : i32
    return %arg0, %c0_i32 : i32, i32
  }
}

</mosaic_0001>

<llo_original>
// kernel: tpu_custom_call.1
$region0: #{tpu_custom_call.1}
  #allocation0 [shape = 'u32[]', space=smem, size = 0x4, offset = 0x4, fixed_abs, tag = 'smem constant byte address 0x4 - core index']
  #allocation1 [shape = 'u32[144,128]{1,0:T(1,128)}', space=vmem, size = 0x12000, scoped, tag = 'internal scratch']
  %s0 = inlined_call_operand.hbm [shape: f32[8,128], index: 0, kind: input, shape index: {}]
  %s1 = inlined_call_operand.hbm [shape: f32[16,128], index: 1, kind: output, shape index: {}]
  %s2 = sld [smem:[#allocation0]]
  $region41: #{tpu_custom_call.1} parent=0
    _
  %s4 = ssub.s32 1, %s2
  %s5 = scalar_select 0, %s4, %s2
  $region1: #{tpu_custom_call.1} parent=0
    #allocation2 [shape = 'u8[4096]{0}', space=vmem, size = 0x1000, scoped, tag = 'input window, operand 0, single buffered']
    #allocation3 [shape = 's32[2]{0}', space=sflag, size = 0x8, scoped, tag = 'scoped memory for tpu_custom_call.1']
    #allocation4 [shape = 's32[2]{0}', space=sflag, size = 0x8, scoped, tag = 'scoped memory for tpu_custom_call.1']
    #allocation5 [shape = 'u8[8192]{0}', space=vmem, size = 0x2000, scoped, tag = 'output window, operand 0']
    %6 = vsyncpa [#allocation3], 0
    %7 = vsyncpa [#allocation4], 0
    %s8 = scalar_lea.sflag [#allocation4], 1
    %9 = vsyncpa %s8, 0
    loop: start=0, step=1, limit=4
    $region2: #{tpu_custom_call.1} parent=1 // loop_pre_header
      _
    $region3: #{tpu_custom_call.1} parent=1 // loop_header
      %s11 = sphi 0, %s15
      %p12 = scmp.ge.s32.totalorder %s11, 4
      %s19 = sphi 0, %s19
      %s21 = sphi 0, %s19
      %s22 = sphi 0, %s21
      %s36 = sphi 0, %s22
      %s42 = sphi 0, %s44
      %s45 = sphi 0, %s42
      %s46 = sphi 0, %s45
      %s62 = sphi 0, %s46
    $region4: #{tpu_custom_call.1} parent=1 // loop_header_branch
      %14 = sbr.rel (%p12) target = $region8
    $region5: #{tpu_custom_call.1} parent=1 // loop_body
      %s16 = ssub.s32 %s11, 1
      %s17 = ssub.s32 %s11, 2
      %s18 = sadd.s32 %s11, 1
      %s20 = sadd.s32 %s19, 1
      %p23 = scmp.eq.s32.totalorder %s11, 1
      %p24 = scmp.ne.s32.totalorder %s19, %s21
      %p25 = scmp.eq.s32.totalorder %s11, 0
      %p26 = por %p24, %p25
      %p27 = scmp.ne.s32.totalorder %s19, %s21
      %p28 = scmp.eq.s32.totalorder %s16, 1
      %p29 = por %p27, %p28
      %p30 = scmp.ne.s32.totalorder %s21, %s22
      %p31 = scmp.eq.s32.totalorder %s16, 0
      %p32 = por %p30, %p31
      %p33 = scmp.ne.s32.totalorder %s21, %s22
      %p34 = scmp.eq.s32.totalorder %s17, 1
      %p35 = por %p33, %p34
      %p37 = scmp.ne.s32.totalorder %s22, %s36
      %p38 = scmp.eq.s32.totalorder %s17, 0
      %p39 = por %p37, %p38
      %s40 = ssub.s32 %s11, %s18
      %p41 = scmp.eq.s32.totalorder %s40, 0
      %s43 = sadd.s32 %s42, 1
      %s44 = scalar_select %p41, %s42, %s43
      %p47 = pneg %p41
      %p48 = scmp.eq.s32.totalorder %s11, 1
      %p49 = por %p47, %p48
      %p50 = scmp.ne.s32.totalorder %s42, %s45
      %p51 = scmp.eq.s32.totalorder %s11, 0
      %p52 = por %p50, %p51
      %p53 = scmp.ne.s32.totalorder %s42, %s45
      %p54 = scmp.eq.s32.totalorder %s16, 1
      %p55 = por %p53, %p54
      %p56 = scmp.ne.s32.totalorder %s45, %s46
      %p57 = scmp.eq.s32.totalorder %s16, 0
      %p58 = por %p56, %p57
      %p59 = scmp.ne.s32.totalorder %s45, %s46
      %p60 = scmp.eq.s32.totalorder %s17, 1
      %p61 = por %p59, %p60
      %p63 = scmp.ne.s32.totalorder %s46, %s62
      %p64 = scmp.eq.s32.totalorder %s17, 0
      %p65 = por %p63, %p64
      %p66 = scmp.le.s32.totalorder 1, %s11
      %p67 = scmp.lt.s32.totalorder %s11, 3
      %p68 = pnand %p66, %p67
      %p69 = pneg %p68
      // Predicated region
      $region9: #{tpu_custom_call.1} parent=5 // pred_check
        _
      $region10: #{tpu_custom_call.1} parent=5 // pred_check_branch
        %71 = sbr.rel (%p68) target = $region12
      $region11: #{tpu_custom_call.1} parent=5 // pred_region
        %s72 = ssub.s32 %s11, 1
        // Predicated region
        $region13: #{tpu_custom_call.1} parent=11 // pred_check
          %p73 = pneg %p32
        $region14: #{tpu_custom_call.1} parent=11 // pred_check_branch
          %75 = sbr.rel (%p73) target = $region16
        $region15: #{tpu_custom_call.1} parent=11 // pred_region
          %s77 = ssub.s32 128, 128
          %78 = vsyncadd [#allocation3], %s77
          %s80 = sshll.u32 [#allocation2], 4
          %s81 = int_to_ptr.vmem [resolvable:$true] %s80
          %83 = dma.hbm_to_vmem [thread:$0]  %s0, 128, %s81, [#allocation3]
        $region16: #{tpu_custom_call.1} parent=11 // pred_fallthru
          _
      $region12: #{tpu_custom_call.1} parent=5 // pred_fallthru
        _
      %p84 = scmp.lt.s32.totalorder %s11, 2
      // Predicated region
      $region17: #{tpu_custom_call.1} parent=5 // pred_check
        %p85 = pneg %p84
      $region18: #{tpu_custom_call.1} parent=5 // pred_check_branch
        %87 = sbr.rel (%p85) target = $region20
      $region19: #{tpu_custom_call.1} parent=5 // pred_region
        _
      $region20: #{tpu_custom_call.1} parent=5 // pred_fallthru
        _
      %p88 = scmp.le.s32.totalorder 1, %s11
      %p89 = scmp.lt.s32.totalorder %s11, 3
      %p90 = pnand %p88, %p89
      %p91 = pneg %p90
      // Predicated region
      $region21: #{tpu_custom_call.1} parent=5 // pred_check
        _
      $region22: #{tpu_custom_call.1} parent=5 // pred_check_branch
        %93 = sbr.rel (%p90) target = $region24
      $region23: #{tpu_custom_call.1} parent=5 // pred_region
        %s94 = ssub.s32 %s11, 1
        // Predicated region
        $region25: #{tpu_custom_call.1} parent=23 // pred_check
          %p95 = pneg %p32
        $region26: #{tpu_custom_call.1} parent=23 // pred_check_branch
          %97 = sbr.rel (%p95) target = $region28
        $region27: #{tpu_custom_call.1} parent=23 // pred_region
          %98 = dma.done [#allocation3], 128
        $region28: #{tpu_custom_call.1} parent=23 // pred_fallthru
          _
        %p99 = pneg %p32
        %p100 = pneg %p29
        %p101 = pneg %p58
        %p102 = pneg %p55
        %s103 = sand.u32 %s45, 1
        %s104 = scalar_lea.sflag [#allocation4], %s103
        %s105 = sand.u32 %s45, 1
        %s106 = smul.addr %s105, 8
        %s107 = scalar_lea.vmem [#allocation5], %s106
        %v108 = vld [vmem:[#allocation2] sm:$0xff]
        %109 = vst [vmem:[%s107] sm:$0xff] %v108
        %s110 = sand.u32 %s45, 1
        %s111 = scalar_lea.sflag [#allocation4], %s110
        %s112 = sand.u32 %s45, 1
        %s113 = smul.addr %s112, 8
        %s114 = scalar_lea.vmem [#allocation5], %s113
        // Predicated region
        $region29: #{tpu_custom_call.1} parent=23 // pred_check
          %p115 = pneg %p55
        $region30: #{tpu_custom_call.1} parent=23 // pred_check_branch
          %117 = sbr.rel (%p115) target = $region32
        $region31: #{tpu_custom_call.1} parent=23 // pred_region
          %s119 = ssub.s32 128, 128
          %120 = vsyncadd %s111, %s119
          %s121 = smul.addr %s16, 128
          %s122 = scalar_lea.hbm %s1, %s121
          %s124 = sshll.u32 %s114, 4
          %s125 = int_to_ptr.vmem [resolvable:$true] %s124
          %127 = dma.vmem_to_hbm [thread:$0]  %s125, 128, %s122, %s111
        $region32: #{tpu_custom_call.1} parent=23 // pred_fallthru
          _
      $region24: #{tpu_custom_call.1} parent=5 // pred_fallthru
        _
      %p128 = scmp.le.s32.totalorder 2, %s11
      // Predicated region
      $region33: #{tpu_custom_call.1} parent=5 // pred_check
        %p129 = pneg %p128
      $region34: #{tpu_custom_call.1} parent=5 // pred_check_branch
        %131 = sbr.rel (%p129) target = $region36
      $region35: #{tpu_custom_call.1} parent=5 // pred_region
        %s132 = ssub.s32 %s11, 2
        // Predicated region
        $region37: #{tpu_custom_call.1} parent=35 // pred_check
          %p133 = pneg %p61
        $region38: #{tpu_custom_call.1} parent=35 // pred_check_branch
          %135 = sbr.rel (%p133) target = $region40
        $region39: #{tpu_custom_call.1} parent=35 // pred_region
          %s136 = sand.u32 %s46, 1
          %s137 = scalar_lea.sflag [#allocation4], %s136
          %s138 = sand.u32 %s46, 1
          %s139 = smul.addr %s138, 8
          %s140 = scalar_lea.vmem [#allocation5], %s139
          %141 = dma.done %s137, 128
        $region40: #{tpu_custom_call.1} parent=35 // pred_fallthru
          _
      $region36: #{tpu_custom_call.1} parent=5 // pred_fallthru
        _
    $region6: #{tpu_custom_call.1} parent=1 // loop_footer
      %s15 = sadd.s32 1, %s11
    $region7: #{tpu_custom_call.1} parent=1 // loop_footer_branch
      %10 = sbr.rel target = $region3
    $region8: #{tpu_custom_call.1} parent=1 // loop_exit
      _
    %142 = vsyncpa [#allocation3], 1
    %s143 = scalar_lea.sflag [#allocation3], 1
    %144 = vsyncpa %s143, 1
    %145 = vsyncpa [#allocation4], 1
    %s146 = scalar_lea.sflag [#allocation4], 1
    %147 = vsyncpa %s146, 1

// kernel: tpu_custom_call.1
$region0: #{tpu_custom_call.1}
  #allocation0 [shape = 'u32[]', space=smem, size = 0x4, offset = 0x4, fixed_abs, tag = 'smem constant byte address 0x4 - core index']
  #allocation1 [shape = 'u32[144,128]{1,0:T(1,128)}', space=vmem, size = 0x12000, scoped, tag = 'internal scratch']
  %s0 = inlined_call_operand.vmem [shape: f32[128,32], index: 0, kind: input, shape index: {}]
  %s1 = inlined_call_operand.vmem [shape: f32[32,128], index: 1, kind: input, shape index: {}]
  %s2 = inlined_call_operand.hbm [shape: f32[128,128], index: 2, kind: output, shape index: {}]
  %s3 = sld [smem:[#allocation0]]
  $region18: #{tpu_custom_call.1} parent=0
    _
  %s5 = ssub.s32 1, %s3
  %s6 = scalar_select 0, %s5, %s3
  $region1: #{tpu_custom_call.1} parent=0
    #allocation2 [shape = 'u8[65536]{0}', space=vmem, size = 0x10000, scoped, tag = 'output window, operand 0, single buffered']
    #allocation3 [shape = 's32[1]{0}', space=sflag, size = 0x4, scoped, tag = 'scoped memory for tpu_custom_call.1']
    %7 = vsyncpa [#allocation3], 0
    // Predicated region
    $region2: #{tpu_custom_call.1} parent=1 // pred_check
      _
    $region3: #{tpu_custom_call.1} parent=1 // pred_check_branch
      %9 = sbr.rel (0) target = $region5
    $region4: #{tpu_custom_call.1} parent=1 // pred_region
      _
    $region5: #{tpu_custom_call.1} parent=1 // pred_fallthru
      _
    // Predicated region
    $region6: #{tpu_custom_call.1} parent=1 // pred_check
      _
    $region7: #{tpu_custom_call.1} parent=1 // pred_check_branch
      %11 = sbr.rel (0) target = $region9
    $region8: #{tpu_custom_call.1} parent=1 // pred_region
      _
    $region9: #{tpu_custom_call.1} parent=1 // pred_fallthru
      _
    %v12 = vld [vmem:[%s0] sm:$0xff]
    %v13 = vld [vmem:[%s0 + $0x8] sm:$0xff]
    %v14 = vld [vmem:[%s0 + $0x10] sm:$0xff]
    %v15 = vld [vmem:[%s0 + $0x18] sm:$0xff]
    %v16 = vld [vmem:[%s0 + $0x20] sm:$0xff]
    %v17 = vld [vmem:[%s0 + $0x28] sm:$0xff]
    %v18 = vld [vmem:[%s0 + $0x30] sm:$0xff]
    %v19 = vld [vmem:[%s0 + $0x38] sm:$0xff]
    %v20 = vld [vmem:[%s0 + $0x40] sm:$0xff]
    %v21 = vld [vmem:[%s0 + $0x48] sm:$0xff]
    %v22 = vld [vmem:[%s0 + $0x50] sm:$0xff]
    %v23 = vld [vmem:[%s0 + $0x58] sm:$0xff]
    %v24 = vld [vmem:[%s0 + $0x60] sm:$0xff]
    %v25 = vld [vmem:[%s0 + $0x68] sm:$0xff]
    %v26 = vld [vmem:[%s0 + $0x70] sm:$0xff]
    %v27 = vld [vmem:[%s0 + $0x78] sm:$0xff]
    %v28 = vld [vmem:[%s1] sm:$0xff]
    %v29 = vld [vmem:[%s1 + $0x8] sm:$0xff]
    %v30 = vld [vmem:[%s1 + $0x10] sm:$0xff]
    %v31 = vld [vmem:[%s1 + $0x18] sm:$0xff]
    %vm32 = vcmask 261120
    %v34 = vsel %vm32, %v12, 0
    %v37 = vsel %vm32, %v13, 0
    %v40 = vsel %vm32, %v14, 0
    %v43 = vsel %vm32, %v15, 0
    %v46 = vsel %vm32, %v16, 0
    %v49 = vsel %vm32, %v17, 0
    %v52 = vsel %vm32, %v18, 0
    %v55 = vsel %vm32, %v19, 0
    %v58 = vsel %vm32, %v20, 0
    %v61 = vsel %vm32, %v21, 0
    %v64 = vsel %vm32, %v22, 0
    %v67 = vsel %vm32, %v23, 0
    %v70 = vsel %vm32, %v24, 0
    %v73 = vsel %vm32, %v25, 0
    %v76 = vsel %vm32, %v26, 0
    %v79 = vsel %vm32, %v27, 0
    %81 = vmatprep.subr.mxu0 0.0
    %82 = vmatpush1.msra.mxu0 0.0
    %83 = vmatprep.subr.mxu0 0.0
    %84 = vmatpush1.msra.mxu0 0.0
    %85 = vmatprep.subr.mxu0 0.0
    %86 = vmatpush1.msra.mxu0 0.0
    %87 = vmatprep.subr.mxu0 0.0
    %88 = vmatpush1.msra.mxu0 0.0
    %89 = vmatprep.subr.mxu0 0.0
    %90 = vmatpush1.msra.mxu0 0.0
    %91 = vmatprep.subr.mxu0 0.0
    %92 = vmatpush1.msra.mxu0 0.0
    %93 = vmatprep.subr.mxu0 0.0
    %94 = vmatpush1.msra.mxu0 0.0
    %95 = vmatprep.subr.mxu0 0.0
    %96 = vmatpush1.msra.mxu0 0.0
    %97 = vmatprep.subr.mxu0 0.0
    %98 = vmatpush1.msra.mxu0 0.0
    %99 = vmatprep.subr.mxu0 0.0
    %100 = vmatpush1.msra.mxu0 0.0
    %101 = vmatprep.subr.mxu0 0.0
    %102 = vmatpush1.msra.mxu0 0.0
    %103 = vmatprep.subr.mxu0 0.0
    %104 = vmatpush1.msra.mxu0 0.0
    %105 = vmatprep.subr.mxu0 0.0
    %106 = vmatpush1.msra.mxu0 %v31
    %107 = vmatprep.subr.mxu0 0.0
    %108 = vmatpush1.msra.mxu0 %v30
    %109 = vmatprep.subr.mxu0 0.0
    %110 = vmatpush1.msra.mxu0 %v29
    %111 = vmatprep.subr.mxu0 0.0
    %112 = vmatpush1.msra.mxu0 %v28
    %113 = vmatprep.subr.mxu0 0.0
    %114 = vmatpush2.msra.mxu0 0.0
    %115 = vmatprep.subr.mxu0 0.0
    %116 = vmatpush2.msra.mxu0 0.0
    %117 = vmatprep.subr.mxu0 0.0
    %118 = vmatpush2.msra.mxu0 0.0
    %119 = vmatprep.subr.mxu0 0.0
    %120 = vmatpush2.msra.mxu0 0.0
    %121 = vmatprep.subr.mxu0 0.0
    %122 = vmatpush2.msra.mxu0 0.0
    %123 = vmatprep.subr.mxu0 0.0
    %124 = vmatpush2.msra.mxu0 0.0
    %125 = vmatprep.subr.mxu0 0.0
    %126 = vmatpush2.msra.mxu0 0.0
    %127 = vmatprep.subr.mxu0 0.0
    %128 = vmatpush2.msra.mxu0 0.0
    %129 = vmatprep.subr.mxu0 0.0
    %130 = vmatpush2.msra.mxu0 0.0
    %131 = vmatprep.subr.mxu0 0.0
    %132 = vmatpush2.msra.mxu0 0.0
    %133 = vmatprep.subr.mxu0 0.0
    %134 = vmatpush2.msra.mxu0 0.0
    %135 = vmatprep.subr.mxu0 0.0
    %136 = vmatpush2.msra.mxu0 0.0
    %137 = vmatprep.subr.mxu0 0.0
    %138 = vmatpush2.msra.mxu0 0.0
    %139 = vmatprep.subr.mxu0 0.0
    %140 = vmatpush2.msra.mxu0 0.0
    %141 = vmatprep.subr.mxu0 0.0
    %142 = vmatpush2.msra.mxu0 0.0
    %143 = vmatprep.subr.mxu0 0.0
    %144 = vmatpush2.msra.mxu0 0.0
    %145 = vmatprep.mubr.f32.mxu0 0.0
    %146 = vmatmul.mubr.f32.gmra.mxu0 %v34
    %v147 = vpop.f32.mrf.mxu0
    %v148 = vadd.f32 0.0, %v147
    %v149 = vpop.f32.mrf.mxu0
    %150 = vmatprep.mubr.f32.mxu0 0.0
    %151 = vmatmul.mubr.f32.gmra.mxu0 %v37
    %v152 = vpop.f32.mrf.mxu0
    %v153 = vadd.f32 0.0, %v152
    %v154 = vpop.f32.mrf.mxu0
    %155 = vmatprep.mubr.f32.mxu0 0.0
    %156 = vmatmul.mubr.f32.gmra.mxu0 %v40
    %v157 = vpop.f32.mrf.mxu0
    %v158 = vadd.f32 0.0, %v157
    %v159 = vpop.f32.mrf.mxu0
    %160 = vmatprep.mubr.f32.mxu0 0.0
    %161 = vmatmul.mubr.f32.gmra.mxu0 %v43
    %v162 = vpop.f32.mrf.mxu0
    %v163 = vadd.f32 0.0, %v162
    %v164 = vpop.f32.mrf.mxu0
    %165 = vmatprep.mubr.f32.mxu0 0.0
    %166 = vmatmul.mubr.f32.gmra.mxu0 %v46
    %v167 = vpop.f32.mrf.mxu0
    %v168 = vadd.f32 0.0, %v167
    %v169 = vpop.f32.mrf.mxu0
    %170 = vmatprep.mubr.f32.mxu0 0.0
    %171 = vmatmul.mubr.f32.gmra.mxu0 %v49
    %v172 = vpop.f32.mrf.mxu0
    %v173 = vadd.f32 0.0, %v172
    %v174 = vpop.f32.mrf.mxu0
    %175 = vmatprep.mubr.f32.mxu0 0.0
    %176 = vmatmul.mubr.f32.gmra.mxu0 %v52
    %v177 = vpop.f32.mrf.mxu0
    %v178 = vadd.f32 0.0, %v177
    %v179 = vpop.f32.mrf.mxu0
    %180 = vmatprep.mubr.f32.mxu0 0.0
    %181 = vmatmul.mubr.f32.gmra.mxu0 %v55
    %v182 = vpop.f32.mrf.mxu0
    %v183 = vadd.f32 0.0, %v182
    %v184 = vpop.f32.mrf.mxu0
    %185 = vmatprep.mubr.f32.mxu0 0.0
    %186 = vmatmul.mubr.f32.gmra.mxu0 %v58
    %v187 = vpop.f32.mrf.mxu0
    %v188 = vadd.f32 0.0, %v187
    %v189 = vpop.f32.mrf.mxu0
    %190 = vmatprep.mubr.f32.mxu0 0.0
    %191 = vmatmul.mubr.f32.gmra.mxu0 %v61
    %v192 = vpop.f32.mrf.mxu0
    %v193 = vadd.f32 0.0, %v192
    %v194 = vpop.f32.mrf.mxu0
    %195 = vmatprep.mubr.f32.mxu0 0.0
    %196 = vmatmul.mubr.f32.gmra.mxu0 %v64
    %v197 = vpop.f32.mrf.mxu0
    %v198 = vadd.f32 0.0, %v197
    %v199 = vpop.f32.mrf.mxu0
    %200 = vmatprep.mubr.f32.mxu0 0.0
    %201 = vmatmul.mubr.f32.gmra.mxu0 %v67
    %v202 = vpop.f32.mrf.mxu0
    %v203 = vadd.f32 0.0, %v202
    %v204 = vpop.f32.mrf.mxu0
    %205 = vmatprep.mubr.f32.mxu0 0.0
    %206 = vmatmul.mubr.f32.gmra.mxu0 %v70
    %v207 = vpop.f32.mrf.mxu0
    %v208 = vadd.f32 0.0, %v207
    %v209 = vpop.f32.mrf.mxu0
    %210 = vmatprep.mubr.f32.mxu0 0.0
    %211 = vmatmul.mubr.f32.gmra.mxu0 %v73
    %v212 = vpop.f32.mrf.mxu0
    %v213 = vadd.f32 0.0, %v212
    %v214 = vpop.f32.mrf.mxu0
    %215 = vmatprep.mubr.f32.mxu0 0.0
    %216 = vmatmul.mubr.f32.gmra.mxu0 %v76
    %v217 = vpop.f32.mrf.mxu0
    %v218 = vadd.f32 0.0, %v217
    %v219 = vpop.f32.mrf.mxu0
    %220 = vmatprep.mubr.f32.mxu0 0.0
    %221 = vmatmul.mubr.f32.gmra.mxu0 %v79
    %v222 = vpop.f32.mrf.mxu0
    %v223 = vadd.f32 0.0, %v222
    %v224 = vpop.f32.mrf.mxu0
    %225 = vdwg.mxu0
    %226 = vst [vmem:[#allocation2] sm:$0xff] %v148
    %227 = vst [vmem:[#allocation2 + $0x8] sm:$0xff] %v153
    %228 = vst [vmem:[#allocation2 + $0x10] sm:$0xff] %v158
    %229 = vst [vmem:[#allocation2 + $0x18] sm:$0xff] %v163
    %230 = vst [vmem:[#allocation2 + $0x20] sm:$0xff] %v168
    %231 = vst [vmem:[#allocation2 + $0x28] sm:$0xff] %v173
    %232 = vst [vmem:[#allocation2 + $0x30] sm:$0xff] %v178
    %233 = vst [vmem:[#allocation2 + $0x38] sm:$0xff] %v183
    %234 = vst [vmem:[#allocation2 + $0x40] sm:$0xff] %v188
    %235 = vst [vmem:[#allocation2 + $0x48] sm:$0xff] %v193
    %236 = vst [vmem:[#allocation2 + $0x50] sm:$0xff] %v198
    %237 = vst [vmem:[#allocation2 + $0x58] sm:$0xff] %v203
    %238 = vst [vmem:[#allocation2 + $0x60] sm:$0xff] %v208
    %239 = vst [vmem:[#allocation2 + $0x68] sm:$0xff] %v213
    %240 = vst [vmem:[#allocation2 + $0x70] sm:$0xff] %v218
    %241 = vst [vmem:[#allocation2 + $0x78] sm:$0xff] %v223
    // Predicated region
    $region10: #{tpu_custom_call.1} parent=1 // pred_check
      _
    $region11: #{tpu_custom_call.1} parent=1 // pred_check_branch
      %243 = sbr.rel (0) target = $region13
    $region12: #{tpu_custom_call.1} parent=1 // pred_region
      %s245 = ssub.s32 2048, 2048
      %246 = vsyncadd [#allocation3], %s245
      %s247 = sshll.u32 [#allocation2], 4
      %s248 = int_to_ptr.vmem [resolvable:$true] %s247
      %253 = dma.vmem_to_hbm [thread:$0]  %s248, 2048, %s2, [#allocation3], 128, 128, 8
    $region13: #{tpu_custom_call.1} parent=1 // pred_fallthru
      _
    // Predicated region
    $region14: #{tpu_custom_call.1} parent=1 // pred_check
      _
    $region15: #{tpu_custom_call.1} parent=1 // pred_check_branch
      %255 = sbr.rel (0) target = $region17
    $region16: #{tpu_custom_call.1} parent=1 // pred_region
      %256 = dma.done [#allocation3], 2048
    $region17: #{tpu_custom_call.1} parent=1 // pred_fallthru
      _
    %257 = vsyncpa [#allocation3], 1

</llo_original>
